<compile_context>
chip_gen: v7x
topology: tpu7x:2x2x1
jax: 0.10.0
libtpu: 0.0.40
codegen_flags: <defaults>
</compile_context>

<pallas_src>
import functools

import jax
import jax.numpy as jnp
import numpy as np
from jax import lax
from jax.experimental import pallas as pl
from jax.experimental.pallas import tpu as pltpu

BN_EPS = 1e-5
# Safe on every generation (v7x has only 64 MiB physical VMEM); blocks below are a
# few MiB at most, so this limit is never the constraint on v5e/v6e either.
_VMEM_LIMIT = 48 * 1024 * 1024


def _pick_batch_block(n, ho, per_img_bytes, target_bytes=8 << 20):
    """Images per pass-1 grid step: divides n, keeps blocks ~<= target (x2 for double
    buffering), keeps the grid >= 2 when possible, and keeps nb*ho a multiple of 8
    (so the y block satisfies the (8,128) rule) unless the grid collapses to 1."""
    def ok(d):
        return n % d == 0 and ((d * ho) % 8 == 0 or n // d == 1)
    for d in range(n, 0, -1):
        if ok(d) and n // d >= min(2, n) and 2 * d * per_img_bytes <= target_bytes:
            return d
    for d in range(n, 0, -1):
        if ok(d):
            return d
    return n


def _pick_row_block(rows, lanes, max_bytes=4 << 20, min_grid=2):
    """Row block for the streaming BN pass: a multiple-of-8 divisor of rows under the
    byte cap, preferring a grid of >= min_grid steps; falls back to the full array."""
    cap = max(1, max_bytes // max(1, lanes * 4))
    best8 = None
    for d in range(min(rows, cap), 0, -1):
        if rows % d or d % 8:
            continue
        if best8 is None:
            best8 = d
        if rows // d >= min_grid:
            return d
    return best8 if best8 is not None else rows


@functools.partial(jax.jit, static_argnames=("kernel_size", "stride", "padding"))
def sepconv1_forward(x_nchw, w_dw, w_pw, gamma, beta,
                     kernel_size=3, stride=2, padding=1):
    """SepConv1 forward.

    x_nchw: (N, Cin, H, W)
    w_dw:   (Cin, 1, k, k)    depthwise Conv2d weight (PyTorch layout)
    w_pw:   (Cout, Cin, 1, 1) pointwise Conv2d weight (PyTorch layout)
    gamma, beta: (Cout,)      BatchNorm2d affine parameters
    Returns (N, Cout, Ho, Wo), training-mode BatchNorm (batch statistics).
    """
    assert stride == 2, "kernel is specialised for the module's stride-2 config"
    n, cin, h, w = x_nchw.shape
    ks = kernel_size
    kk = ks * ks
    cout = w_pw.shape[0]
    ho = (h + 2 * padding - ks) // stride + 1
    wo = (w + 2 * padding - ks) // stride + 1

    # PyTorch weight layouts -> flat matrices used by the kernels.
    wdw = jnp.transpose(w_dw.reshape(cin, kk)).astype(jnp.float32)     # (kk, cin)
    wpw = jnp.transpose(w_pw.reshape(cout, cin)).astype(jnp.float32)   # (cin, cout)

    # ---- glue: NCHW -> NHWC, zero-pad, parity-split, fuse (W, Cin) into lanes -----
    x = jnp.transpose(x_nchw, (0, 2, 3, 1)).astype(jnp.float32)
    hp, wp = h + 2 * padding, w + 2 * padding
    hp2, wp2 = hp + (hp % 2), wp + (wp % 2)          # pad to even so parities align
    assert 2 * (ho - 1) + (ks - 1) <= hp2 - 1 and 2 * (wo - 1) + (ks - 1) <= wp2 - 1
    xp = jnp.pad(x, ((0, 0), (padding, hp2 - h - padding),
                     (padding, wp2 - w - padding), (0, 0)))
    hh, wh = hp2 // 2, wp2 // 2
    lx = wh * cin           # pass-1 input lane width (fused W*Cin)
    ly = wo * cout          # y lane width (fused W*Cout)
    # parity[r*2+c] = rows of parity r, cols of parity c of the padded image
    parity = [xp[:, r::2, c::2, :].reshape(n, hh, lx) for r in (0, 1) for c in (0, 1)]

    # depthwise weights tiled along the fused (w, cin) lane axis: (kk, 1, wo*cin)
    wdw_t = jnp.tile(wdw[:, None, :], (1, wo, 1)).reshape(kk, 1, wo * cin)
    # pointwise as a block-diagonal (wo*cin, wo*cout) matrix: one MXU matmul maps the
    # lane-fused depthwise result straight to the lane-fused y layout.
    wbig = jnp.einsum("wv,cd->wcvd", jnp.eye(wo, dtype=jnp.float32),
                      wpw).reshape(wo * cin, ly)

    per_img_bytes = 4 * (4 * hh * lx + ho * ly)
    nb = _pick_batch_block(n, ho, per_img_bytes)
    nsteps = n // nb

    # ---- pass 1: depthwise (VPU) + pointwise (MXU) conv, per-block BN partials ----
    def conv_stats_kernel(x00_ref, x01_ref, x10_ref, x11_ref, wdw_ref, wbig_ref,
                          y_ref, st_ref):
        pars = (x00_ref, x01_ref, x10_ref, x11_ref)
        acc = None
        for k in range(kk):                              # 9 VPU FMAs, wo*cin lanes
            kh, kw = k // ks, k % ks
            src = pars[(kh % 2) * 2 + (kw % 2)]
            dr, dc = kh // 2, kw // 2
            tap = src[:, dr:dr + ho, dc * cin:dc * cin + wo * cin]   # (nb, ho, wo*cin)
            term = tap * wdw_ref[k]                                  # (1, wo*cin) bcast
            acc = term if acc is None else acc + term
        dw2 = acc.reshape(nb * ho, wo * cin)             # leading-dim merge only
        # pointwise on the MXU (vector-extended slot is otherwise idle here)
        y2 = jnp.dot(dw2, wbig_ref[...], preferred_element_type=jnp.float32)
        y_ref[...] = y2.astype(y_ref.dtype)              # lane-dense (nb*ho, wo*cout)
        s = jnp.sum(y2, axis=0, keepdims=True)           # per-block BN partials
        ss = jnp.sum(y2 * y2, axis=0, keepdims=True)
        st_ref[0:1, 0:1, :] = s.reshape(1, 1, ly)
        st_ref[0:1, 1:2, :] = ss.reshape(1, 1, ly)

    y, stats_partial = pl.pallas_call(
        conv_stats_kernel,
        grid=(nsteps,),
        in_specs=[pl.BlockSpec((nb, hh, lx), lambda i: (i, 0, 0)),
                  pl.BlockSpec((nb, hh, lx), lambda i: (i, 0, 0)),
                  pl.BlockSpec((nb, hh, lx), lambda i: (i, 0, 0)),
                  pl.BlockSpec((nb, hh, lx), lambda i: (i, 0, 0)),
                  pl.BlockSpec((kk, 1, wo * cin), lambda i: (0, 0, 0)),
                  pl.BlockSpec((wo * cin, ly), lambda i: (0, 0))],
        out_specs=[pl.BlockSpec((nb * ho, ly), lambda i: (i, 0)),
                   pl.BlockSpec((1, 2, ly), lambda i: (i, 0, 0))],
        out_shape=[jax.ShapeDtypeStruct((n * ho, ly), jnp.float32),
                   jax.ShapeDtypeStruct((nsteps, 2, ly), jnp.float32)],
        compiler_params=pltpu.CompilerParams(
            dimension_semantics=("parallel",),
            vmem_limit_bytes=_VMEM_LIMIT),
    )(*parity, wdw_t, wbig)

    # ---- combine partial stats (tiny) and fold BN into scale/shift in the wrapper --
    stats = jnp.sum(stats_partial, axis=0).reshape(2, wo, cout).sum(axis=1)  # (2,cout)
    count = float(n * ho * wo)
    mean = stats[0] / count
    var = jnp.maximum(stats[1] / count - mean * mean, 0.0)   # biased batch variance
    scale_c = gamma * lax.rsqrt(var + BN_EPS)
    shift_c = beta - mean * scale_c
    scale = jnp.tile(scale_c, (wo,)).reshape(1, ly)           # lane = w*cout + co
    shift = jnp.tile(shift_c, (wo,)).reshape(1, ly)

    # ---- pass 2: lane-dense streamed y*scale + shift, ReLU --------------------------
    rows = n * ho
    tr = _pick_row_block(rows, ly)

    def bn_relu_kernel(scale_ref, shift_ref, y_ref, o_ref):
        o_ref[...] = jnp.maximum(y_ref[...] * scale_ref[...] + shift_ref[...],
                                 0.0).astype(o_ref.dtype)

    out2d = pl.pallas_call(
        bn_relu_kernel,
        grid=(rows // tr,),
        in_specs=[pl.BlockSpec((1, ly), lambda i: (0, 0)),
                  pl.BlockSpec((1, ly), lambda i: (0, 0)),
                  pl.BlockSpec((tr, ly), lambda i: (i, 0))],
        out_specs=pl.BlockSpec((tr, ly), lambda i: (i, 0)),
        out_shape=jax.ShapeDtypeStruct((rows, ly), jnp.float32),
        compiler_params=pltpu.CompilerParams(
            dimension_semantics=("parallel",),
            vmem_limit_bytes=_VMEM_LIMIT),
    )(scale, shift, y)

    # ---- back to the module's NCHW output layout
    return out2d.reshape(n, ho, wo, cout).transpose(0, 3, 1, 2)


def sepconv1_reference(x_nchw, w_dw, w_pw, gamma, beta,
                       kernel_size=3, stride=2, padding=1):
    """Pure-JAX reference (lax.conv) taking the same PyTorch-layout weights."""
    n, cin, h, w = x_nchw.shape
    cout = w_pw.shape[0]
    x = jnp.transpose(x_nchw, (0, 2, 3, 1))
    w_dw_hwio = jnp.transpose(w_dw, (2, 3, 1, 0))                      # (k,k,1,cin)
    dw = lax.conv_general_dilated(
        x, w_dw_hwio, window_strides=(stride, stride),
        padding=[(padding, padding), (padding, padding)],
        dimension_numbers=("NHWC", "HWIO", "NHWC"),
        feature_group_count=cin)
    w_pw_hwio = jnp.transpose(w_pw.reshape(cout, cin)).reshape(1, 1, cin, cout)
    pw = lax.conv_general_dilated(
        dw, w_pw_hwio, window_strides=(1, 1), padding=[(0, 0), (0, 0)],
        dimension_numbers=("NHWC", "HWIO", "NHWC"))
    mean = jnp.mean(pw, axis=(0, 1, 2), keepdims=True)
    var = jnp.mean(jnp.square(pw - mean), axis=(0, 1, 2), keepdims=True)
    yref = (pw - mean) * lax.rsqrt(var + BN_EPS) * gamma.reshape(1, 1, 1, cout) \
        + beta.reshape(1, 1, 1, cout)
    return jnp.transpose(jnp.maximum(yref, 0.0), (0, 3, 1, 2))


if __name__ == "__main__":
    # Small shapes consistent with the module: N=2, Cin=4, Cout=8, H=W=16.
    N, CIN, COUT, H, W = 2, 4, 8, 16, 16
    key = jax.random.PRNGKey(0)
    k_x, k_dw, k_pw, k_g, k_b = jax.random.split(key, 5)

    x = jax.random.normal(k_x, (N, CIN, H, W), dtype=jnp.float32)
    # Weights in the module's native PyTorch layouts:
    #   depthwise Conv2d(CIN, CIN, 3, stride=2, padding=1, groups=CIN, bias=False)
    #   pointwise Conv2d(CIN, COUT, 1, bias=False); BatchNorm2d(COUT, affine=True)
    w_dw = 0.1 * jax.random.normal(k_dw, (CIN, 1, 3, 3), dtype=jnp.float32)
    w_pw = 0.1 * jax.random.normal(k_pw, (COUT, CIN, 1, 1), dtype=jnp.float32)
    gamma = 1.0 + 0.1 * jax.random.normal(k_g, (COUT,), dtype=jnp.float32)
    beta = 0.1 * jax.random.normal(k_b, (COUT,), dtype=jnp.float32)

    out = jax.block_until_ready(sepconv1_forward(x, w_dw, w_pw, gamma, beta))
    ref = jax.block_until_ready(sepconv1_reference(x, w_dw, w_pw, gamma, beta))
    np.testing.assert_allclose(np.asarray(out), np.asarray(ref), rtol=1e-4, atol=1e-4)

    print("KERNEL_OK")
</pallas_src>

<mosaic_0001>
module attributes {stable_mosaic.version = 11 : i64} {
  func.func @bn_relu_kernel(%arg0: i32, %arg1: memref<1x64xf32, #tpu.memory_space<vmem>>, %arg2: memref<1x64xf32, #tpu.memory_space<vmem>>, %arg3: memref<8x64xf32, #tpu.memory_space<vmem>>, %arg4: memref<8x64xf32, #tpu.memory_space<vmem>>) attributes {dimension_semantics = [#tpu.dimension_semantics<parallel>], iteration_bounds = array<i64: 2>, scalar_prefetch = 0 : i64, scratch_operands = 0 : i64, tpu.core_type = #tpu.core_type<tc>, window_params = [{pipeline_mode = #tpu.pipeline_mode<synchronous>, transform_indices = @transform_0, window_bounds = array<i64: 1, 64>}, {pipeline_mode = #tpu.pipeline_mode<synchronous>, transform_indices = @transform_1, window_bounds = array<i64: 1, 64>}, {transform_indices = @transform_2, window_bounds = array<i64: 8, 64>}, {transform_indices = @transform_3, window_bounds = array<i64: 8, 64>}]} {
    %c0 = arith.constant 0 : index
    %c0_0 = arith.constant 0 : index
    %0 = vector.load %arg3[%c0, %c0_0] : memref<8x64xf32, #tpu.memory_space<vmem>>, vector<8x64xf32>
    %c0_1 = arith.constant 0 : index
    %c0_2 = arith.constant 0 : index
    %1 = vector.load %arg1[%c0_1, %c0_2] : memref<1x64xf32, #tpu.memory_space<vmem>>, vector<1x64xf32>
    %2 = vector.broadcast %1 : vector<1x64xf32> to vector<8x64xf32>
    %3 = arith.mulf %0, %2 : vector<8x64xf32>
    %c0_3 = arith.constant 0 : index
    %c0_4 = arith.constant 0 : index
    %4 = vector.load %arg2[%c0_3, %c0_4] : memref<1x64xf32, #tpu.memory_space<vmem>>, vector<1x64xf32>
    %5 = vector.broadcast %4 : vector<1x64xf32> to vector<8x64xf32>
    %6 = arith.addf %3, %5 : vector<8x64xf32>
    %cst = arith.constant 0.000000e+00 : f32
    %7 = vector.broadcast %cst : f32 to vector<8x64xf32>
    %8 = arith.maximumf %6, %7 : vector<8x64xf32>
    %c0_5 = arith.constant 0 : index
    %c0_6 = arith.constant 0 : index
    %9 = vector.load %arg4[%c0_5, %c0_6] : memref<8x64xf32, #tpu.memory_space<vmem>>, vector<8x64xf32>
    tpu.vector_store %arg4[%c0_5, %c0_6], %8 {strides = array<i32>} : memref<8x64xf32, #tpu.memory_space<vmem>>, vector<8x64xf32>,
    return
  }
  func.func @transform_0(%arg0: i32) -> (i32, i32) {
    %c0_i32 = arith.constant 0 : i32
    %c0_i32_0 = arith.constant 0 : i32
    %c0_i32_1 = arith.constant 0 : i32
    return %c0_i32, %c0_i32_0 : i32, i32
  }
  func.func @transform_1(%arg0: i32) -> (i32, i32) {
    %c0_i32 = arith.constant 0 : i32
    %c0_i32_0 = arith.constant 0 : i32
    %c0_i32_1 = arith.constant 0 : i32
    return %c0_i32, %c0_i32_0 : i32, i32
  }
  func.func @transform_2(%arg0: i32) -> (i32, i32) {
    %c0_i32 = arith.constant 0 : i32
    %c0_i32_0 = arith.constant 0 : i32
    return %arg0, %c0_i32 : i32, i32
  }
  func.func @transform_3(%arg0: i32) -> (i32, i32) {
    %c0_i32 = arith.constant 0 : i32
    %c0_i32_0 = arith.constant 0 : i32
    return %arg0, %c0_i32 : i32, i32
  }
}

module attributes {stable_mosaic.version = 11 : i64} {
  func.func @conv_stats_kernel(%arg0: i32, %arg1: memref<1x9x36xf32, #tpu.memory_space<vmem>>, %arg2: memref<1x9x36xf32, #tpu.memory_space<vmem>>, %arg3: memref<1x9x36xf32, #tpu.memory_space<vmem>>, %arg4: memref<1x9x36xf32, #tpu.memory_space<vmem>>, %arg5: memref<9x1x32xf32, #tpu.memory_space<vmem>>, %arg6: memref<32x64xf32, #tpu.memory_space<vmem>>, %arg7: memref<8x64xf32, #tpu.memory_space<vmem>>, %arg8: memref<1x2x64xf32, #tpu.memory_space<vmem>>) attributes {dimension_semantics = [#tpu.dimension_semantics<parallel>], iteration_bounds = array<i64: 2>, scalar_prefetch = 0 : i64, scratch_operands = 0 : i64, tpu.core_type = #tpu.core_type<tc>, window_params = [{transform_indices = @transform_0, window_bounds = array<i64: 1, 9, 36>}, {transform_indices = @transform_1, window_bounds = array<i64: 1, 9, 36>}, {transform_indices = @transform_2, window_bounds = array<i64: 1, 9, 36>}, {transform_indices = @transform_3, window_bounds = array<i64: 1, 9, 36>}, {pipeline_mode = #tpu.pipeline_mode<synchronous>, transform_indices = @transform_4, window_bounds = array<i64: 9, 1, 32>}, {pipeline_mode = #tpu.pipeline_mode<synchronous>, transform_indices = @transform_5, window_bounds = array<i64: 32, 64>}, {transform_indices = @transform_6, window_bounds = array<i64: 8, 64>}, {transform_indices = @transform_7, window_bounds = array<i64: 1, 2, 64>}]} {
    %c0 = arith.constant 0 : index
    %c0_0 = arith.constant 0 : index
    %c0_1 = arith.constant 0 : index
    %0 = vector.load %arg1[%c0, %c0_0, %c0_1] : memref<1x9x36xf32, #tpu.memory_space<vmem>>, vector<1x8x32xf32>
    %c0_2 = arith.constant 0 : index
    %c0_3 = arith.constant 0 : index
    %c0_4 = arith.constant 0 : index
    %1 = vector.load %arg5[%c0_2, %c0_3, %c0_4] : memref<9x1x32xf32, #tpu.memory_space<vmem>>, vector<1x1x32xf32>
    %2 = vector.shape_cast %1 : vector<1x1x32xf32> to vector<1x32xf32>
    %3 = vector.shape_cast %2 : vector<1x32xf32> to vector<1x1x32xf32>
    %4 = vector.broadcast %3 : vector<1x1x32xf32> to vector<1x8x32xf32>
    %5 = arith.mulf %0, %4 : vector<1x8x32xf32>
    %c0_5 = arith.constant 0 : index
    %c0_6 = arith.constant 0 : index
    %c0_7 = arith.constant 0 : index
    %6 = vector.load %arg2[%c0_5, %c0_6, %c0_7] : memref<1x9x36xf32, #tpu.memory_space<vmem>>, vector<1x8x32xf32>
    %c1 = arith.constant 1 : index
    %c0_8 = arith.constant 0 : index
    %c0_9 = arith.constant 0 : index
    %7 = vector.load %arg5[%c1, %c0_8, %c0_9] : memref<9x1x32xf32, #tpu.memory_space<vmem>>, vector<1x1x32xf32>
    %8 = vector.shape_cast %7 : vector<1x1x32xf32> to vector<1x32xf32>
    %9 = vector.shape_cast %8 : vector<1x32xf32> to vector<1x1x32xf32>
    %10 = vector.broadcast %9 : vector<1x1x32xf32> to vector<1x8x32xf32>
    %11 = arith.mulf %6, %10 : vector<1x8x32xf32>
    %12 = arith.addf %5, %11 : vector<1x8x32xf32>
    %c0_10 = arith.constant 0 : index
    %c0_11 = arith.constant 0 : index
    %c4 = arith.constant 4 : index
    %13 = vector.load %arg1[%c0_10, %c0_11, %c4] : memref<1x9x36xf32, #tpu.memory_space<vmem>>, vector<1x8x32xf32>
    %c2 = arith.constant 2 : index
    %c0_12 = arith.constant 0 : index
    %c0_13 = arith.constant 0 : index
    %14 = vector.load %arg5[%c2, %c0_12, %c0_13] : memref<9x1x32xf32, #tpu.memory_space<vmem>>, vector<1x1x32xf32>
    %15 = vector.shape_cast %14 : vector<1x1x32xf32> to vector<1x32xf32>
    %16 = vector.shape_cast %15 : vector<1x32xf32> to vector<1x1x32xf32>
    %17 = vector.broadcast %16 : vector<1x1x32xf32> to vector<1x8x32xf32>
    %18 = arith.mulf %13, %17 : vector<1x8x32xf32>
    %19 = arith.addf %12, %18 : vector<1x8x32xf32>
    %c0_14 = arith.constant 0 : index
    %c0_15 = arith.constant 0 : index
    %c0_16 = arith.constant 0 : index
    %20 = vector.load %arg3[%c0_14, %c0_15, %c0_16] : memref<1x9x36xf32, #tpu.memory_space<vmem>>, vector<1x8x32xf32>
    %c3 = arith.constant 3 : index
    %c0_17 = arith.constant 0 : index
    %c0_18 = arith.constant 0 : index
    %21 = vector.load %arg5[%c3, %c0_17, %c0_18] : memref<9x1x32xf32, #tpu.memory_space<vmem>>, vector<1x1x32xf32>
    %22 = vector.shape_cast %21 : vector<1x1x32xf32> to vector<1x32xf32>
    %23 = vector.shape_cast %22 : vector<1x32xf32> to vector<1x1x32xf32>
    %24 = vector.broadcast %23 : vector<1x1x32xf32> to vector<1x8x32xf32>
    %25 = arith.mulf %20, %24 : vector<1x8x32xf32>
    %26 = arith.addf %19, %25 : vector<1x8x32xf32>
    %c0_19 = arith.constant 0 : index
    %c0_20 = arith.constant 0 : index
    %c0_21 = arith.constant 0 : index
    %27 = vector.load %arg4[%c0_19, %c0_20, %c0_21] : memref<1x9x36xf32, #tpu.memory_space<vmem>>, vector<1x8x32xf32>
    %c4_22 = arith.constant 4 : index
    %c0_23 = arith.constant 0 : index
    %c0_24 = arith.constant 0 : index
    %28 = vector.load %arg5[%c4_22, %c0_23, %c0_24] : memref<9x1x32xf32, #tpu.memory_space<vmem>>, vector<1x1x32xf32>
    %29 = vector.shape_cast %28 : vector<1x1x32xf32> to vector<1x32xf32>
    %30 = vector.shape_cast %29 : vector<1x32xf32> to vector<1x1x32xf32>
    %31 = vector.broadcast %30 : vector<1x1x32xf32> to vector<1x8x32xf32>
    %32 = arith.mulf %27, %31 : vector<1x8x32xf32>
    %33 = arith.addf %26, %32 : vector<1x8x32xf32>
    %c0_25 = arith.constant 0 : index
    %c0_26 = arith.constant 0 : index
    %c4_27 = arith.constant 4 : index
    %34 = vector.load %arg3[%c0_25, %c0_26, %c4_27] : memref<1x9x36xf32, #tpu.memory_space<vmem>>, vector<1x8x32xf32>
    %c5 = arith.constant 5 : index
    %c0_28 = arith.constant 0 : index
    %c0_29 = arith.constant 0 : index
    %35 = vector.load %arg5[%c5, %c0_28, %c0_29] : memref<9x1x32xf32, #tpu.memory_space<vmem>>, vector<1x1x32xf32>
    %36 = vector.shape_cast %35 : vector<1x1x32xf32> to vector<1x32xf32>
    %37 = vector.shape_cast %36 : vector<1x32xf32> to vector<1x1x32xf32>
    %38 = vector.broadcast %37 : vector<1x1x32xf32> to vector<1x8x32xf32>
    %39 = arith.mulf %34, %38 : vector<1x8x32xf32>
    %40 = arith.addf %33, %39 : vector<1x8x32xf32>
    %c0_30 = arith.constant 0 : index
    %c1_31 = arith.constant 1 : index
    %c0_32 = arith.constant 0 : index
    %41 = vector.load %arg1[%c0_30, %c1_31, %c0_32] : memref<1x9x36xf32, #tpu.memory_space<vmem>>, vector<1x8x32xf32>
    %c6 = arith.constant 6 : index
    %c0_33 = arith.constant 0 : index
    %c0_34 = arith.constant 0 : index
    %42 = vector.load %arg5[%c6, %c0_33, %c0_34] : memref<9x1x32xf32, #tpu.memory_space<vmem>>, vector<1x1x32xf32>
    %43 = vector.shape_cast %42 : vector<1x1x32xf32> to vector<1x32xf32>
    %44 = vector.shape_cast %43 : vector<1x32xf32> to vector<1x1x32xf32>
    %45 = vector.broadcast %44 : vector<1x1x32xf32> to vector<1x8x32xf32>
    %46 = arith.mulf %41, %45 : vector<1x8x32xf32>
    %47 = arith.addf %40, %46 : vector<1x8x32xf32>
    %c0_35 = arith.constant 0 : index
    %c1_36 = arith.constant 1 : index
    %c0_37 = arith.constant 0 : index
    %48 = vector.load %arg2[%c0_35, %c1_36, %c0_37] : memref<1x9x36xf32, #tpu.memory_space<vmem>>, vector<1x8x32xf32>
    %c7 = arith.constant 7 : index
    %c0_38 = arith.constant 0 : index
    %c0_39 = arith.constant 0 : index
    %49 = vector.load %arg5[%c7, %c0_38, %c0_39] : memref<9x1x32xf32, #tpu.memory_space<vmem>>, vector<1x1x32xf32>
    %50 = vector.shape_cast %49 : vector<1x1x32xf32> to vector<1x32xf32>
    %51 = vector.shape_cast %50 : vector<1x32xf32> to vector<1x1x32xf32>
    %52 = vector.broadcast %51 : vector<1x1x32xf32> to vector<1x8x32xf32>
    %53 = arith.mulf %48, %52 : vector<1x8x32xf32>
    %54 = arith.addf %47, %53 : vector<1x8x32xf32>
    %c0_40 = arith.constant 0 : index
    %c1_41 = arith.constant 1 : index
    %c4_42 = arith.constant 4 : index
    %55 = vector.load %arg1[%c0_40, %c1_41, %c4_42] : memref<1x9x36xf32, #tpu.memory_space<vmem>>, vector<1x8x32xf32>
    %c8 = arith.constant 8 : index
    %c0_43 = arith.constant 0 : index
    %c0_44 = arith.constant 0 : index
    %56 = vector.load %arg5[%c8, %c0_43, %c0_44] : memref<9x1x32xf32, #tpu.memory_space<vmem>>, vector<1x1x32xf32>
    %57 = vector.shape_cast %56 : vector<1x1x32xf32> to vector<1x32xf32>
    %58 = vector.shape_cast %57 : vector<1x32xf32> to vector<1x1x32xf32>
    %59 = vector.broadcast %58 : vector<1x1x32xf32> to vector<1x8x32xf32>
    %60 = arith.mulf %55, %59 : vector<1x8x32xf32>
    %61 = arith.addf %54, %60 : vector<1x8x32xf32>
    %62 = vector.shape_cast %61 : vector<1x8x32xf32> to vector<8x32xf32>
    %c0_45 = arith.constant 0 : index
    %c0_46 = arith.constant 0 : index
    %63 = vector.load %arg6[%c0_45, %c0_46] : memref<32x64xf32, #tpu.memory_space<vmem>>, vector<32x64xf32>
    %cst = arith.constant dense<0.000000e+00> : vector<8x64xf32>
    %64 = tpu.matmul %62, %63, %cst {dimension_numbers = #tpu.dot_dimension_numbers<[1], [0], [0], [1], [0, 0, 1, 1], [], []>} : vector<8x32xf32>, vector<32x64xf32>, vector<8x64xf32> -> vector<8x64xf32>
    %c0_47 = arith.constant 0 : index
    %c0_48 = arith.constant 0 : index
    %65 = vector.load %arg7[%c0_47, %c0_48] : memref<8x64xf32, #tpu.memory_space<vmem>>, vector<8x64xf32>
    tpu.vector_store %arg7[%c0_47, %c0_48], %64 {strides = array<i32>} : memref<8x64xf32, #tpu.memory_space<vmem>>, vector<8x64xf32>,
    %cst_49 = arith.constant dense<0.000000e+00> : vector<64xf32>
    %66 = vector.multi_reduction <add>, %64, %cst_49 [0] : vector<8x64xf32> to vector<64xf32>
    %67 = vector.shape_cast %66 : vector<64xf32> to vector<1x64xf32>
    %68 = arith.mulf %64, %64 : vector<8x64xf32>
    %cst_50 = arith.constant dense<0.000000e+00> : vector<64xf32>
    %69 = vector.multi_reduction <add>, %68, %cst_50 [0] : vector<8x64xf32> to vector<64xf32>
    %70 = vector.shape_cast %69 : vector<64xf32> to vector<1x64xf32>
    %71 = vector.shape_cast %67 : vector<1x64xf32> to vector<1x1x64xf32>
    %c0_51 = arith.constant 0 : index
    %c0_52 = arith.constant 0 : index
    %c0_53 = arith.constant 0 : index
    %72 = vector.load %arg8[%c0_51, %c0_52, %c0_53] : memref<1x2x64xf32, #tpu.memory_space<vmem>>, vector<1x1x64xf32>
    tpu.vector_store %arg8[%c0_51, %c0_52, %c0_53], %71 {strides = array<i32>} : memref<1x2x64xf32, #tpu.memory_space<vmem>>, vector<1x1x64xf32>,
    %73 = vector.shape_cast %70 : vector<1x64xf32> to vector<1x1x64xf32>
    %c0_54 = arith.constant 0 : index
    %c1_55 = arith.constant 1 : index
    %c0_56 = arith.constant 0 : index
    %74 = vector.load %arg8[%c0_54, %c1_55, %c0_56] : memref<1x2x64xf32, #tpu.memory_space<vmem>>, vector<1x1x64xf32>
    tpu.vector_store %arg8[%c0_54, %c1_55, %c0_56], %73 {strides = array<i32>} : memref<1x2x64xf32, #tpu.memory_space<vmem>>, vector<1x1x64xf32>,
    return
  }
  func.func @transform_0(%arg0: i32) -> (i32, i32, i32) {
    %c0_i32 = arith.constant 0 : i32
    %c0_i32_0 = arith.constant 0 : i32
    %c0_i32_1 = arith.constant 0 : i32
    return %arg0, %c0_i32, %c0_i32_0 : i32, i32, i32
  }
  func.func @transform_1(%arg0: i32) -> (i32, i32, i32) {
    %c0_i32 = arith.constant 0 : i32
    %c0_i32_0 = arith.constant 0 : i32
    %c0_i32_1 = arith.constant 0 : i32
    return %arg0, %c0_i32, %c0_i32_0 : i32, i32, i32
  }
  func.func @transform_2(%arg0: i32) -> (i32, i32, i32) {
    %c0_i32 = arith.constant 0 : i32
    %c0_i32_0 = arith.constant 0 : i32
    %c0_i32_1 = arith.constant 0 : i32
    return %arg0, %c0_i32, %c0_i32_0 : i32, i32, i32
  }
  func.func @transform_3(%arg0: i32) -> (i32, i32, i32) {
    %c0_i32 = arith.constant 0 : i32
    %c0_i32_0 = arith.constant 0 : i32
    %c0_i32_1 = arith.constant 0 : i32
    return %arg0, %c0_i32, %c0_i32_0 : i32, i32, i32
  }
  func.func @transform_4(%arg0: i32) -> (i32, i32, i32) {
    %c0_i32 = arith.constant 0 : i32
    %c0_i32_0 = arith.constant 0 : i32
    %c0_i32_1 = arith.constant 0 : i32
    %c0_i32_2 = arith.constant 0 : i32
    return %c0_i32, %c0_i32_0, %c0_i32_1 : i32, i32, i32
  }
  func.func @transform_5(%arg0: i32) -> (i32, i32) {
    %c0_i32 = arith.constant 0 : i32
    %c0_i32_0 = arith.constant 0 : i32
    %c0_i32_1 = arith.constant 0 : i32
    return %c0_i32, %c0_i32_0 : i32, i32
  }
  func.func @transform_6(%arg0: i32) -> (i32, i32) {
    %c0_i32 = arith.constant 0 : i32
    %c0_i32_0 = arith.constant 0 : i32
    return %arg0, %c0_i32 : i32, i32
  }
  func.func @transform_7(%arg0: i32) -> (i32, i32, i32) {
    %c0_i32 = arith.constant 0 : i32
    %c0_i32_0 = arith.constant 0 : i32
    %c0_i32_1 = arith.constant 0 : i32
    return %arg0, %c0_i32, %c0_i32_0 : i32, i32, i32
  }
}

</mosaic_0001>

<llo_original>
// kernel: tile.21
$region0: #{tile.21}
  #allocation0 [shape = 's32[1]{0}', space=sflag, size = 0x4, scoped, tag = 'scoped memory for tile.21']
  %s0 = inlined_call_operand.vmem [shape: f32[8], index: 0, kind: input, shape index: {}]
  %s1 = inlined_call_operand.vmem [shape: f32[8,8], index: 1, kind: output, shape index: {}]
  // Predicated region
  $region2: #{tile.21} parent=0 // pred_check
    _
  $region3: #{tile.21} parent=0 // pred_check_branch
    %3 = sbr.rel (0) target = $region5
  $region4: #{tile.21} parent=0 // pred_region
    _
  $region5: #{tile.21} parent=0 // pred_fallthru
    _
  %v4 = vld [vmem:[%s0] ss:$0 sm:$0xff]
  %5 = vst [vmem:[%s1] sm:$0xff] %v4

// kernel: tile.22
$region0: #{tile.22}
  %s0 = inlined_call_operand.vmem [shape: f32[8,8], index: 0, kind: input, shape index: {}]
  %s1 = inlined_call_operand.vmem [shape: f32[1,64], index: 1, kind: output, shape index: {}]
  $region1: #{tile.22} parent=0
    #allocation0 [shape = 'u8[4096]{0}', space=vmem, size = 0x1000, scoped, tag = 'scoped mem for output reshape']
    %v2 = vld [vmem:[%s0] sm:$0x1]
    %vm3 = vcmask 64512
    %4 = vst.msk [vmem:[#allocation0] sm:$0x1] %vm3, %v2
    %s5 = scalar_lea.vmem %s0, 7
    %v6 = vld [vmem:[%s5] sm:$0x1]
    %7 = vrot.lane.b32.xlu0 %v6, 56
    %v8 = vpop.permute.xlu0 %7
    %vm9 = vcmask 523712
    %10 = vst.msk [vmem:[#allocation0] sm:$0x1] %vm9, %v8
    %s11 = scalar_lea.vmem %s0, 6
    %v12 = vld [vmem:[%s11] sm:$0x1]
    %13 = vrot.lane.b32.xlu0 %v12, 48
    %v14 = vpop.permute.xlu0 %13
    %vm15 = vcmask 458112
    %16 = vst.msk [vmem:[#allocation0] sm:$0x1] %vm15, %v14
    %s17 = scalar_lea.vmem %s0, 5
    %v18 = vld [vmem:[%s17] sm:$0x1]
    %19 = vrot.lane.b32.xlu0 %v18, 40
    %v20 = vpop.permute.xlu0 %19
    %vm21 = vcmask 392512
    %22 = vst.msk [vmem:[#allocation0] sm:$0x1] %vm21, %v20
    %s23 = scalar_lea.vmem %s0, 4
    %v24 = vld [vmem:[%s23] sm:$0x1]
    %25 = vrot.lane.b32.xlu0 %v24, 32
    %v26 = vpop.permute.xlu0 %25
    %vm27 = vcmask 326912
    %28 = vst.msk [vmem:[#allocation0] sm:$0x1] %vm27, %v26
    %s29 = scalar_lea.vmem %s0, 3
    %v30 = vld [vmem:[%s29] sm:$0x1]
    %31 = vrot.lane.b32.xlu0 %v30, 24
    %v32 = vpop.permute.xlu0 %31
    %vm33 = vcmask 261312
    %34 = vst.msk [vmem:[#allocation0] sm:$0x1] %vm33, %v32
    %s35 = scalar_lea.vmem %s0, 2
    %v36 = vld [vmem:[%s35] sm:$0x1]
    %37 = vrot.lane.b32.xlu0 %v36, 16
    %v38 = vpop.permute.xlu0 %37
    %vm39 = vcmask 195712
    %40 = vst.msk [vmem:[#allocation0] sm:$0x1] %vm39, %v38
    %s41 = scalar_lea.vmem %s0, 1
    %v42 = vld [vmem:[%s41] sm:$0x1]
    %43 = vrot.lane.b32.xlu0 %v42, 8
    %v44 = vpop.permute.xlu0 %43
    %vm45 = vcmask 130112
    %46 = vst.msk [vmem:[#allocation0] sm:$0x1] %vm45, %v44
    %s48 = sshllo.u32 0, 1
    %v50 = vld [vmem:[#allocation0] sm:%s48]
    %s51 = sshllo.u32 0, 1
    %52 = vst [vmem:[%s1] sm:%s51] %v50

// kernel: sepconv1_forward.3
$region0: #{sepconv1_forward.3}
  #allocation0 [shape = 'u32[]', space=smem, size = 0x4, offset = 0x4, fixed_abs, tag = 'smem constant byte address 0x4 - core index']
  #allocation1 [shape = 'u32[144,128]{1,0:T(1,128)}', space=vmem, size = 0x12000, scoped, tag = 'internal scratch']
  %s0 = inlined_call_operand.vmem [shape: f32[1,64], index: 0, kind: input, shape index: {}]
  %s1 = inlined_call_operand.vmem [shape: f32[1,64], index: 1, kind: input, shape index: {}]
  %s2 = inlined_call_operand.vmem [shape: f32[16,64], index: 2, kind: input, shape index: {}]
  %s3 = inlined_call_operand.vmem [shape: f32[16,64], index: 3, kind: output, shape index: {}]
  %s4 = sld [smem:[#allocation0]]
  $region45: #{sepconv1_forward.3} parent=0
    _
  %s6 = ssub.s32 1, %s4
  %s7 = scalar_select 0, %s6, %s4
  loop: start=0, step=1, limit=4
  $region2: #{sepconv1_forward.3} parent=0 // loop_pre_header
    _
  $region3: #{sepconv1_forward.3} parent=0 // loop_header
    %s9 = sphi 0, %s13
    %p10 = scmp.ge.s32.totalorder %s9, 4
    %s17 = sphi 0, %s17
    %s19 = sphi 0, %s17
    %s20 = sphi 0, %s19
    %s34 = sphi 0, %s20
    %s38 = sphi 0, %s38
    %s40 = sphi 0, %s38
    %s41 = sphi 0, %s40
    %s55 = sphi 0, %s41
    %s61 = sphi 0, %s63
    %s64 = sphi 0, %s61
    %s65 = sphi 0, %s64
    %s81 = sphi 0, %s65
    %s87 = sphi 0, %s89
    %s90 = sphi 0, %s87
    %s91 = sphi 0, %s90
    %s107 = sphi 0, %s91
  $region4: #{sepconv1_forward.3} parent=0 // loop_header_branch
    %12 = sbr.rel (%p10) target = $region8
  $region5: #{sepconv1_forward.3} parent=0 // loop_body
    %s14 = ssub.s32 %s9, 1
    %s15 = ssub.s32 %s9, 2
    %s16 = sadd.s32 %s9, 1
    %s18 = sadd.s32 %s17, 1
    %p21 = scmp.eq.s32.totalorder %s9, 1
    %p22 = scmp.ne.s32.totalorder %s17, %s19
    %p23 = scmp.eq.s32.totalorder %s9, 0
    %p24 = por %p22, %p23
    %p25 = scmp.ne.s32.totalorder %s17, %s19
    %p26 = scmp.eq.s32.totalorder %s14, 1
    %p27 = por %p25, %p26
    %p28 = scmp.ne.s32.totalorder %s19, %s20
    %p29 = scmp.eq.s32.totalorder %s14, 0
    %p30 = por %p28, %p29
    %p31 = scmp.ne.s32.totalorder %s19, %s20
    %p32 = scmp.eq.s32.totalorder %s15, 1
    %p33 = por %p31, %p32
    %p35 = scmp.ne.s32.totalorder %s20, %s34
    %p36 = scmp.eq.s32.totalorder %s15, 0
    %p37 = por %p35, %p36
    %s39 = sadd.s32 %s38, 1
    %p42 = scmp.eq.s32.totalorder %s9, 1
    %p43 = scmp.ne.s32.totalorder %s38, %s40
    %p44 = scmp.eq.s32.totalorder %s9, 0
    %p45 = por %p43, %p44
    %p46 = scmp.ne.s32.totalorder %s38, %s40
    %p47 = scmp.eq.s32.totalorder %s14, 1
    %p48 = por %p46, %p47
    %p49 = scmp.ne.s32.totalorder %s40, %s41
    %p50 = scmp.eq.s32.totalorder %s14, 0
    %p51 = por %p49, %p50
    %p52 = scmp.ne.s32.totalorder %s40, %s41
    %p53 = scmp.eq.s32.totalorder %s15, 1
    %p54 = por %p52, %p53
    %p56 = scmp.ne.s32.totalorder %s41, %s55
    %p57 = scmp.eq.s32.totalorder %s15, 0
    %p58 = por %p56, %p57
    %s59 = ssub.s32 %s9, %s16
    %p60 = scmp.eq.s32.totalorder %s59, 0
    %s62 = sadd.s32 %s61, 1
    %s63 = scalar_select %p60, %s61, %s62
    %p66 = pneg %p60
    %p67 = scmp.eq.s32.totalorder %s9, 1
    %p68 = por %p66, %p67
    %p69 = scmp.ne.s32.totalorder %s61, %s64
    %p70 = scmp.eq.s32.totalorder %s9, 0
    %p71 = por %p69, %p70
    %p72 = scmp.ne.s32.totalorder %s61, %s64
    %p73 = scmp.eq.s32.totalorder %s14, 1
    %p74 = por %p72, %p73
    %p75 = scmp.ne.s32.totalorder %s64, %s65
    %p76 = scmp.eq.s32.totalorder %s14, 0
    %p77 = por %p75, %p76
    %p78 = scmp.ne.s32.totalorder %s64, %s65
    %p79 = scmp.eq.s32.totalorder %s15, 1
    %p80 = por %p78, %p79
    %p82 = scmp.ne.s32.totalorder %s65, %s81
    %p83 = scmp.eq.s32.totalorder %s15, 0
    %p84 = por %p82, %p83
    %s85 = ssub.s32 %s9, %s16
    %p86 = scmp.eq.s32.totalorder %s85, 0
    %s88 = sadd.s32 %s87, 1
    %s89 = scalar_select %p86, %s87, %s88
    %p92 = pneg %p86
    %p93 = scmp.eq.s32.totalorder %s9, 1
    %p94 = por %p92, %p93
    %p95 = scmp.ne.s32.totalorder %s87, %s90
    %p96 = scmp.eq.s32.totalorder %s9, 0
    %p97 = por %p95, %p96
    %p98 = scmp.ne.s32.totalorder %s87, %s90
    %p99 = scmp.eq.s32.totalorder %s14, 1
    %p100 = por %p98, %p99
    %p101 = scmp.ne.s32.totalorder %s90, %s91
    %p102 = scmp.eq.s32.totalorder %s14, 0
    %p103 = por %p101, %p102
    %p104 = scmp.ne.s32.totalorder %s90, %s91
    %p105 = scmp.eq.s32.totalorder %s15, 1
    %p106 = por %p104, %p105
    %p108 = scmp.ne.s32.totalorder %s91, %s107
    %p109 = scmp.eq.s32.totalorder %s15, 0
    %p110 = por %p108, %p109
    %p111 = scmp.le.s32.totalorder 1, %s9
    %p112 = scmp.lt.s32.totalorder %s9, 3
    %p113 = pnand %p111, %p112
    %p114 = pneg %p113
    // Predicated region
    $region9: #{sepconv1_forward.3} parent=5 // pred_check
      _
    $region10: #{sepconv1_forward.3} parent=5 // pred_check_branch
      %116 = sbr.rel (%p113) target = $region12
    $region11: #{sepconv1_forward.3} parent=5 // pred_region
      %s117 = ssub.s32 %s9, 1
      // Predicated region
      $region13: #{sepconv1_forward.3} parent=11 // pred_check
        %p118 = pneg %p30
      $region14: #{sepconv1_forward.3} parent=11 // pred_check_branch
        %120 = sbr.rel (%p118) target = $region16
      $region15: #{sepconv1_forward.3} parent=11 // pred_region
        _
      $region16: #{sepconv1_forward.3} parent=11 // pred_fallthru
        _
      // Predicated region
      $region17: #{sepconv1_forward.3} parent=11 // pred_check
        %p121 = pneg %p51
      $region18: #{sepconv1_forward.3} parent=11 // pred_check_branch
        %123 = sbr.rel (%p121) target = $region20
      $region19: #{sepconv1_forward.3} parent=11 // pred_region
        _
      $region20: #{sepconv1_forward.3} parent=11 // pred_fallthru
        _
    $region12: #{sepconv1_forward.3} parent=5 // pred_fallthru
      _
    %p124 = scmp.lt.s32.totalorder %s9, 2
    // Predicated region
    $region21: #{sepconv1_forward.3} parent=5 // pred_check
      %p125 = pneg %p124
    $region22: #{sepconv1_forward.3} parent=5 // pred_check_branch
      %127 = sbr.rel (%p125) target = $region24
    $region23: #{sepconv1_forward.3} parent=5 // pred_region
      // Predicated region
      $region25: #{sepconv1_forward.3} parent=23 // pred_check
        %p128 = pneg %p71
      $region26: #{sepconv1_forward.3} parent=23 // pred_check_branch
        %130 = sbr.rel (%p128) target = $region28
      $region27: #{sepconv1_forward.3} parent=23 // pred_region
        %p131 = scmp.lt.s32.totalorder %s9, 1
        %s132 = scalar_select %p131, %s9, 1
        %s133 = smul.addr %s132, 8
        %s134 = scalar_lea.vmem %s2, %s133
      $region28: #{sepconv1_forward.3} parent=23 // pred_fallthru
        _
    $region24: #{sepconv1_forward.3} parent=5 // pred_fallthru
      _
    %p135 = scmp.le.s32.totalorder 1, %s9
    %p136 = scmp.lt.s32.totalorder %s9, 3
    %p137 = pnand %p135, %p136
    %p138 = pneg %p137
    // Predicated region
    $region29: #{sepconv1_forward.3} parent=5 // pred_check
      _
    $region30: #{sepconv1_forward.3} parent=5 // pred_check_branch
      %140 = sbr.rel (%p137) target = $region32
    $region31: #{sepconv1_forward.3} parent=5 // pred_region
      %s141 = ssub.s32 %s9, 1
      %p142 = pneg %p30
      %p143 = pneg %p27
      %p144 = pneg %p51
      %p145 = pneg %p48
      %p146 = scmp.lt.s32.totalorder %s14, 1
      %s147 = scalar_select %p146, %s14, 1
      %s148 = smul.addr %s147, 8
      %s149 = scalar_lea.vmem %s2, %s148
      %p150 = pneg %p77
      %p151 = pneg %p74
      %p152 = pneg %p103
      %p153 = pneg %p100
      %p154 = scmp.lt.s32.totalorder %s14, 1
      %s155 = scalar_select %p154, %s14, 1
      %s156 = smul.addr %s155, 8
      %s157 = scalar_lea.vmem %s3, %s156
      %p158 = scmp.lt.s32.totalorder %s14, 1
      %s159 = scalar_select %p158, %s14, 1
      %s160 = smul.addr %s159, 8
      %s161 = scalar_lea.vmem %s2, %s160
      %p162 = scmp.lt.s32.totalorder %s14, 1
      %s163 = scalar_select %p162, %s14, 1
      %s164 = smul.addr %s163, 8
      %s165 = scalar_lea.vmem %s3, %s164
      %v166 = vld [vmem:[%s161] sm:$0xff]
      %v167 = vld [vmem:[%s0] sm:$0x1]
      %v169 = vlaneseq
      %v170 = vshrl.u32 %v169, 7
      %v171 = vsub.s32 0, %v170
      %v172 = vrot.slane %v167, %v171
      %v174 = vmul.f32 %v166, %v172
      %v175 = vld [vmem:[%s1] sm:$0x1]
      %v177 = vlaneseq
      %v178 = vshrl.u32 %v177, 7
      %v179 = vsub.s32 0, %v178
      %v180 = vrot.slane %v175, %v179
      %v182 = vadd.f32 %v174, %v180
      %v183 = vmax.f32 %v182, 0.0
      %vm184 = vcmask 523264
      %185 = vst.msk [vmem:[%s165] sm:$0xff] %vm184, %v183
      %p186 = scmp.lt.s32.totalorder %s14, 1
      %s187 = scalar_select %p186, %s14, 1
      %s188 = smul.addr %s187, 8
      %s189 = scalar_lea.vmem %s3, %s188
      // Predicated region
      $region33: #{sepconv1_forward.3} parent=31 // pred_check
        %p190 = pneg %p100
      $region34: #{sepconv1_forward.3} parent=31 // pred_check_branch
        %192 = sbr.rel (%p190) target = $region36
      $region35: #{sepconv1_forward.3} parent=31 // pred_region
        _
      $region36: #{sepconv1_forward.3} parent=31 // pred_fallthru
        _
    $region32: #{sepconv1_forward.3} parent=5 // pred_fallthru
      _
    %p193 = scmp.le.s32.totalorder 2, %s9
    // Predicated region
    $region37: #{sepconv1_forward.3} parent=5 // pred_check
      %p194 = pneg %p193
    $region38: #{sepconv1_forward.3} parent=5 // pred_check_branch
      %196 = sbr.rel (%p194) target = $region40
    $region39: #{sepconv1_forward.3} parent=5 // pred_region
      %s197 = ssub.s32 %s9, 2
      // Predicated region
      $region41: #{sepconv1_forward.3} parent=39 // pred_check
        %p198 = pneg %p106
      $region42: #{sepconv1_forward.3} parent=39 // pred_check_branch
        %200 = sbr.rel (%p198) target = $region44
      $region43: #{sepconv1_forward.3} parent=39 // pred_region
        %p201 = scmp.lt.s32.totalorder %s15, 1
        %s202 = scalar_select %p201, %s15, 1
        %s203 = smul.addr %s202, 8
        %s204 = scalar_lea.vmem %s3, %s203
      $region44: #{sepconv1_forward.3} parent=39 // pred_fallthru
        _
    $region40: #{sepconv1_forward.3} parent=5 // pred_fallthru
      _
  $region6: #{sepconv1_forward.3} parent=0 // loop_footer
    %s13 = sadd.s32 1, %s9
  $region7: #{sepconv1_forward.3} parent=0 // loop_footer_branch
    %8 = sbr.rel target = $region3
  $region8: #{sepconv1_forward.3} parent=0 // loop_exit
    _

// kernel: sepconv1_forward.2
$region0: #{sepconv1_forward.2}
  #allocation0 [shape = 'u32[]', space=smem, size = 0x4, offset = 0x4, fixed_abs, tag = 'smem constant byte address 0x4 - core index']
  #allocation1 [shape = 'u32[144,128]{1,0:T(1,128)}', space=vmem, size = 0x12000, scoped, tag = 'internal scratch']
  %s0 = inlined_call_operand.vmem [shape: f32[2,9,36], index: 0, kind: input, shape index: {}]
  %s1 = inlined_call_operand.vmem [shape: f32[2,9,36], index: 1, kind: input, shape index: {}]
  %s2 = inlined_call_operand.vmem [shape: f32[2,9,36], index: 2, kind: input, shape index: {}]
  %s3 = inlined_call_operand.vmem [shape: f32[2,9,36], index: 3, kind: input, shape index: {}]
  %s4 = inlined_call_operand.vmem [shape: f32[9,1,32], index: 4, kind: input, shape index: {}]
  %s5 = inlined_call_operand.vmem [shape: f32[32,64], index: 5, kind: input, shape index: {}]
  %s6 = inlined_call_operand.vmem [shape: f32[16,64], index: 6, kind: output, shape index: {0}]
  %s7 = inlined_call_operand.vmem [shape: f32[2,2,64], index: 7, kind: output, shape index: {1}]
  %8 = xla_tuple %s6, %s7
  %s9 = sld [smem:[#allocation0]]
  $region65: #{sepconv1_forward.2} parent=0
    _
  %s11 = ssub.s32 1, %s9
  %s12 = scalar_select 0, %s11, %s9
  loop: start=0, step=1, limit=4
  $region2: #{sepconv1_forward.2} parent=0 // loop_pre_header
    _
  $region3: #{sepconv1_forward.2} parent=0 // loop_header
    %s14 = sphi 0, %s18
    %p15 = scmp.ge.s32.totalorder %s14, 4
    %s24 = sphi 0, %s26
    %s27 = sphi 0, %s24
    %s28 = sphi 0, %s27
    %s44 = sphi 0, %s28
    %s50 = sphi 0, %s52
    %s53 = sphi 0, %s50
    %s54 = sphi 0, %s53
    %s70 = sphi 0, %s54
    %s76 = sphi 0, %s78
    %s79 = sphi 0, %s76
    %s80 = sphi 0, %s79
    %s96 = sphi 0, %s80
    %s102 = sphi 0, %s104
    %s105 = sphi 0, %s102
    %s106 = sphi 0, %s105
    %s122 = sphi 0, %s106
    %s126 = sphi 0, %s126
    %s128 = sphi 0, %s126
    %s129 = sphi 0, %s128
    %s143 = sphi 0, %s129
    %s147 = sphi 0, %s147
    %s149 = sphi 0, %s147
    %s150 = sphi 0, %s149
    %s164 = sphi 0, %s150
    %s170 = sphi 0, %s172
    %s173 = sphi 0, %s170
    %s174 = sphi 0, %s173
    %s190 = sphi 0, %s174
    %s196 = sphi 0, %s198
    %s199 = sphi 0, %s196
    %s200 = sphi 0, %s199
    %s216 = sphi 0, %s200
  $region4: #{sepconv1_forward.2} parent=0 // loop_header_branch
    %17 = sbr.rel (%p15) target = $region8
  $region5: #{sepconv1_forward.2} parent=0 // loop_body
    %s19 = ssub.s32 %s14, 1
    %s20 = ssub.s32 %s14, 2
    %s21 = sadd.s32 %s14, 1
    %s22 = ssub.s32 %s14, %s21
    %p23 = scmp.eq.s32.totalorder %s22, 0
    %s25 = sadd.s32 %s24, 1
    %s26 = scalar_select %p23, %s24, %s25
    %p29 = pneg %p23
    %p30 = scmp.eq.s32.totalorder %s14, 1
    %p31 = por %p29, %p30
    %p32 = scmp.ne.s32.totalorder %s24, %s27
    %p33 = scmp.eq.s32.totalorder %s14, 0
    %p34 = por %p32, %p33
    %p35 = scmp.ne.s32.totalorder %s24, %s27
    %p36 = scmp.eq.s32.totalorder %s19, 1
    %p37 = por %p35, %p36
    %p38 = scmp.ne.s32.totalorder %s27, %s28
    %p39 = scmp.eq.s32.totalorder %s19, 0
    %p40 = por %p38, %p39
    %p41 = scmp.ne.s32.totalorder %s27, %s28
    %p42 = scmp.eq.s32.totalorder %s20, 1
    %p43 = por %p41, %p42
    %p45 = scmp.ne.s32.totalorder %s28, %s44
    %p46 = scmp.eq.s32.totalorder %s20, 0
    %p47 = por %p45, %p46
    %s48 = ssub.s32 %s14, %s21
    %p49 = scmp.eq.s32.totalorder %s48, 0
    %s51 = sadd.s32 %s50, 1
    %s52 = scalar_select %p49, %s50, %s51
    %p55 = pneg %p49
    %p56 = scmp.eq.s32.totalorder %s14, 1
    %p57 = por %p55, %p56
    %p58 = scmp.ne.s32.totalorder %s50, %s53
    %p59 = scmp.eq.s32.totalorder %s14, 0
    %p60 = por %p58, %p59
    %p61 = scmp.ne.s32.totalorder %s50, %s53
    %p62 = scmp.eq.s32.totalorder %s19, 1
    %p63 = por %p61, %p62
    %p64 = scmp.ne.s32.totalorder %s53, %s54
    %p65 = scmp.eq.s32.totalorder %s19, 0
    %p66 = por %p64, %p65
    %p67 = scmp.ne.s32.totalorder %s53, %s54
    %p68 = scmp.eq.s32.totalorder %s20, 1
    %p69 = por %p67, %p68
    %p71 = scmp.ne.s32.totalorder %s54, %s70
    %p72 = scmp.eq.s32.totalorder %s20, 0
    %p73 = por %p71, %p72
    %s74 = ssub.s32 %s14, %s21
    %p75 = scmp.eq.s32.totalorder %s74, 0
    %s77 = sadd.s32 %s76, 1
    %s78 = scalar_select %p75, %s76, %s77
    %p81 = pneg %p75
    %p82 = scmp.eq.s32.totalorder %s14, 1
    %p83 = por %p81, %p82
    %p84 = scmp.ne.s32.totalorder %s76, %s79
    %p85 = scmp.eq.s32.totalorder %s14, 0
    %p86 = por %p84, %p85
    %p87 = scmp.ne.s32.totalorder %s76, %s79
    %p88 = scmp.eq.s32.totalorder %s19, 1
    %p89 = por %p87, %p88
    %p90 = scmp.ne.s32.totalorder %s79, %s80
    %p91 = scmp.eq.s32.totalorder %s19, 0
    %p92 = por %p90, %p91
    %p93 = scmp.ne.s32.totalorder %s79, %s80
    %p94 = scmp.eq.s32.totalorder %s20, 1
    %p95 = por %p93, %p94
    %p97 = scmp.ne.s32.totalorder %s80, %s96
    %p98 = scmp.eq.s32.totalorder %s20, 0
    %p99 = por %p97, %p98
    %s100 = ssub.s32 %s14, %s21
    %p101 = scmp.eq.s32.totalorder %s100, 0
    %s103 = sadd.s32 %s102, 1
    %s104 = scalar_select %p101, %s102, %s103
    %p107 = pneg %p101
    %p108 = scmp.eq.s32.totalorder %s14, 1
    %p109 = por %p107, %p108
    %p110 = scmp.ne.s32.totalorder %s102, %s105
    %p111 = scmp.eq.s32.totalorder %s14, 0
    %p112 = por %p110, %p111
    %p113 = scmp.ne.s32.totalorder %s102, %s105
    %p114 = scmp.eq.s32.totalorder %s19, 1
    %p115 = por %p113, %p114
    %p116 = scmp.ne.s32.totalorder %s105, %s106
    %p117 = scmp.eq.s32.totalorder %s19, 0
    %p118 = por %p116, %p117
    %p119 = scmp.ne.s32.totalorder %s105, %s106
    %p120 = scmp.eq.s32.totalorder %s20, 1
    %p121 = por %p119, %p120
    %p123 = scmp.ne.s32.totalorder %s106, %s122
    %p124 = scmp.eq.s32.totalorder %s20, 0
    %p125 = por %p123, %p124
    %s127 = sadd.s32 %s126, 1
    %p130 = scmp.eq.s32.totalorder %s14, 1
    %p131 = scmp.ne.s32.totalorder %s126, %s128
    %p132 = scmp.eq.s32.totalorder %s14, 0
    %p133 = por %p131, %p132
    %p134 = scmp.ne.s32.totalorder %s126, %s128
    %p135 = scmp.eq.s32.totalorder %s19, 1
    %p136 = por %p134, %p135
    %p137 = scmp.ne.s32.totalorder %s128, %s129
    %p138 = scmp.eq.s32.totalorder %s19, 0
    %p139 = por %p137, %p138
    %p140 = scmp.ne.s32.totalorder %s128, %s129
    %p141 = scmp.eq.s32.totalorder %s20, 1
    %p142 = por %p140, %p141
    %p144 = scmp.ne.s32.totalorder %s129, %s143
    %p145 = scmp.eq.s32.totalorder %s20, 0
    %p146 = por %p144, %p145
    %s148 = sadd.s32 %s147, 1
    %p151 = scmp.eq.s32.totalorder %s14, 1
    %p152 = scmp.ne.s32.totalorder %s147, %s149
    %p153 = scmp.eq.s32.totalorder %s14, 0
    %p154 = por %p152, %p153
    %p155 = scmp.ne.s32.totalorder %s147, %s149
    %p156 = scmp.eq.s32.totalorder %s19, 1
    %p157 = por %p155, %p156
    %p158 = scmp.ne.s32.totalorder %s149, %s150
    %p159 = scmp.eq.s32.totalorder %s19, 0
    %p160 = por %p158, %p159
    %p161 = scmp.ne.s32.totalorder %s149, %s150
    %p162 = scmp.eq.s32.totalorder %s20, 1
    %p163 = por %p161, %p162
    %p165 = scmp.ne.s32.totalorder %s150, %s164
    %p166 = scmp.eq.s32.totalorder %s20, 0
    %p167 = por %p165, %p166
    %s168 = ssub.s32 %s14, %s21
    %p169 = scmp.eq.s32.totalorder %s168, 0
    %s171 = sadd.s32 %s170, 1
    %s172 = scalar_select %p169, %s170, %s171
    %p175 = pneg %p169
    %p176 = scmp.eq.s32.totalorder %s14, 1
    %p177 = por %p175, %p176
    %p178 = scmp.ne.s32.totalorder %s170, %s173
    %p179 = scmp.eq.s32.totalorder %s14, 0
    %p180 = por %p178, %p179
    %p181 = scmp.ne.s32.totalorder %s170, %s173
    %p182 = scmp.eq.s32.totalorder %s19, 1
    %p183 = por %p181, %p182
    %p184 = scmp.ne.s32.totalorder %s173, %s174
    %p185 = scmp.eq.s32.totalorder %s19, 0
    %p186 = por %p184, %p185
    %p187 = scmp.ne.s32.totalorder %s173, %s174
    %p188 = scmp.eq.s32.totalorder %s20, 1
    %p189 = por %p187, %p188
    %p191 = scmp.ne.s32.totalorder %s174, %s190
    %p192 = scmp.eq.s32.totalorder %s20, 0
    %p193 = por %p191, %p192
    %s194 = ssub.s32 %s14, %s21
    %p195 = scmp.eq.s32.totalorder %s194, 0
    %s197 = sadd.s32 %s196, 1
    %s198 = scalar_select %p195, %s196, %s197
    %p201 = pneg %p195
    %p202 = scmp.eq.s32.totalorder %s14, 1
    %p203 = por %p201, %p202
    %p204 = scmp.ne.s32.totalorder %s196, %s199
    %p205 = scmp.eq.s32.totalorder %s14, 0
    %p206 = por %p204, %p205
    %p207 = scmp.ne.s32.totalorder %s196, %s199
    %p208 = scmp.eq.s32.totalorder %s19, 1
    %p209 = por %p207, %p208
    %p210 = scmp.ne.s32.totalorder %s199, %s200
    %p211 = scmp.eq.s32.totalorder %s19, 0
    %p212 = por %p210, %p211
    %p213 = scmp.ne.s32.totalorder %s199, %s200
    %p214 = scmp.eq.s32.totalorder %s20, 1
    %p215 = por %p213, %p214
    %p217 = scmp.ne.s32.totalorder %s200, %s216
    %p218 = scmp.eq.s32.totalorder %s20, 0
    %p219 = por %p217, %p218
    %p220 = scmp.le.s32.totalorder 1, %s14
    %p221 = scmp.lt.s32.totalorder %s14, 3
    %p222 = pnand %p220, %p221
    %p223 = pneg %p222
    // Predicated region
    $region9: #{sepconv1_forward.2} parent=5 // pred_check
      _
    $region10: #{sepconv1_forward.2} parent=5 // pred_check_branch
      %225 = sbr.rel (%p222) target = $region12
    $region11: #{sepconv1_forward.2} parent=5 // pred_region
      %s226 = ssub.s32 %s14, 1
      // Predicated region
      $region13: #{sepconv1_forward.2} parent=11 // pred_check
        %p227 = pneg %p139
      $region14: #{sepconv1_forward.2} parent=11 // pred_check_branch
        %229 = sbr.rel (%p227) target = $region16
      $region15: #{sepconv1_forward.2} parent=11 // pred_region
        _
      $region16: #{sepconv1_forward.2} parent=11 // pred_fallthru
        _
      // Predicated region
      $region17: #{sepconv1_forward.2} parent=11 // pred_check
        %p230 = pneg %p160
      $region18: #{sepconv1_forward.2} parent=11 // pred_check_branch
        %232 = sbr.rel (%p230) target = $region20
      $region19: #{sepconv1_forward.2} parent=11 // pred_region
        _
      $region20: #{sepconv1_forward.2} parent=11 // pred_fallthru
        _
    $region12: #{sepconv1_forward.2} parent=5 // pred_fallthru
      _
    %p233 = scmp.lt.s32.totalorder %s14, 2
    // Predicated region
    $region21: #{sepconv1_forward.2} parent=5 // pred_check
      %p234 = pneg %p233
    $region22: #{sepconv1_forward.2} parent=5 // pred_check_branch
      %236 = sbr.rel (%p234) target = $region24
    $region23: #{sepconv1_forward.2} parent=5 // pred_region
      // Predicated region
      $region25: #{sepconv1_forward.2} parent=23 // pred_check
        %p237 = pneg %p34
      $region26: #{sepconv1_forward.2} parent=23 // pred_check_branch
        %239 = sbr.rel (%p237) target = $region28
      $region27: #{sepconv1_forward.2} parent=23 // pred_region
        %p240 = scmp.lt.s32.totalorder %s14, 1
        %s241 = scalar_select %p240, %s14, 1
        %s242 = smul.addr %s241, 2
        %s243 = smul.addr %s242, 8
        %s244 = scalar_lea.vmem %s0, %s243
      $region28: #{sepconv1_forward.2} parent=23 // pred_fallthru
        _
      // Predicated region
      $region29: #{sepconv1_forward.2} parent=23 // pred_check
        %p245 = pneg %p60
      $region30: #{sepconv1_forward.2} parent=23 // pred_check_branch
        %247 = sbr.rel (%p245) target = $region32
      $region31: #{sepconv1_forward.2} parent=23 // pred_region
        %p248 = scmp.lt.s32.totalorder %s14, 1
        %s249 = scalar_select %p248, %s14, 1
        %s250 = smul.addr %s249, 2
        %s251 = smul.addr %s250, 8
        %s252 = scalar_lea.vmem %s1, %s251
      $region32: #{sepconv1_forward.2} parent=23 // pred_fallthru
        _
      // Predicated region
      $region33: #{sepconv1_forward.2} parent=23 // pred_check
        %p253 = pneg %p86
      $region34: #{sepconv1_forward.2} parent=23 // pred_check_branch
        %255 = sbr.rel (%p253) target = $region36
      $region35: #{sepconv1_forward.2} parent=23 // pred_region
        %p256 = scmp.lt.s32.totalorder %s14, 1
        %s257 = scalar_select %p256, %s14, 1
        %s258 = smul.addr %s257, 2
        %s259 = smul.addr %s258, 8
        %s260 = scalar_lea.vmem %s2, %s259
      $region36: #{sepconv1_forward.2} parent=23 // pred_fallthru
        _
      // Predicated region
      $region37: #{sepconv1_forward.2} parent=23 // pred_check
        %p261 = pneg %p112
      $region38: #{sepconv1_forward.2} parent=23 // pred_check_branch
        %263 = sbr.rel (%p261) target = $region40
      $region39: #{sepconv1_forward.2} parent=23 // pred_region
        %p264 = scmp.lt.s32.totalorder %s14, 1
        %s265 = scalar_select %p264, %s14, 1
        %s266 = smul.addr %s265, 2
        %s267 = smul.addr %s266, 8
        %s268 = scalar_lea.vmem %s3, %s267
      $region40: #{sepconv1_forward.2} parent=23 // pred_fallthru
        _
    $region24: #{sepconv1_forward.2} parent=5 // pred_fallthru
      _
    %p269 = scmp.le.s32.totalorder 1, %s14
    %p270 = scmp.lt.s32.totalorder %s14, 3
    %p271 = pnand %p269, %p270
    %p272 = pneg %p271
    // Predicated region
    $region41: #{sepconv1_forward.2} parent=5 // pred_check
      _
    $region42: #{sepconv1_forward.2} parent=5 // pred_check_branch
      %274 = sbr.rel (%p271) target = $region44
    $region43: #{sepconv1_forward.2} parent=5 // pred_region
      %s275 = ssub.s32 %s14, 1
      %p276 = scmp.lt.s32.totalorder %s19, 1
      %s277 = scalar_select %p276, %s19, 1
      %s278 = smul.addr %s277, 2
      %s279 = smul.addr %s278, 8
      %s280 = scalar_lea.vmem %s0, %s279
      %p281 = pneg %p40
      %p282 = pneg %p37
      %p283 = scmp.lt.s32.totalorder %s19, 1
      %s284 = scalar_select %p283, %s19, 1
      %s285 = smul.addr %s284, 2
      %s286 = smul.addr %s285, 8
      %s287 = scalar_lea.vmem %s1, %s286
      %p288 = pneg %p66
      %p289 = pneg %p63
      %p290 = scmp.lt.s32.totalorder %s19, 1
      %s291 = scalar_select %p290, %s19, 1
      %s292 = smul.addr %s291, 2
      %s293 = smul.addr %s292, 8
      %s294 = scalar_lea.vmem %s2, %s293
      %p295 = pneg %p92
      %p296 = pneg %p89
      %p297 = scmp.lt.s32.totalorder %s19, 1
      %s298 = scalar_select %p297, %s19, 1
      %s299 = smul.addr %s298, 2
      %s300 = smul.addr %s299, 8
      %s301 = scalar_lea.vmem %s3, %s300
      %p302 = pneg %p118
      %p303 = pneg %p115
      %p304 = pneg %p139
      %p305 = pneg %p136
      %p306 = pneg %p160
      %p307 = pneg %p157
      %p308 = pneg %p186
      %p309 = pneg %p183
      %p310 = scmp.lt.s32.totalorder %s19, 1
      %s311 = scalar_select %p310, %s19, 1
      %s312 = smul.addr %s311, 8
      %s313 = scalar_lea.vmem %s6, %s312
      %p314 = pneg %p212
      %p315 = pneg %p209
      %p316 = scmp.lt.s32.totalorder %s19, 1
      %s317 = scalar_select %p316, %s19, 1
      %s318 = smul.addr %s317, 2
      %s319 = scalar_lea.vmem %s7, %s318
      %p320 = scmp.lt.s32.totalorder %s19, 1
      %s321 = scalar_select %p320, %s19, 1
      %s322 = smul.addr %s321, 2
      %s323 = smul.addr %s322, 8
      %s324 = scalar_lea.vmem %s0, %s323
      %p325 = scmp.lt.s32.totalorder %s19, 1
      %s326 = scalar_select %p325, %s19, 1
      %s327 = smul.addr %s326, 2
      %s328 = smul.addr %s327, 8
      %s329 = scalar_lea.vmem %s1, %s328
      %p330 = scmp.lt.s32.totalorder %s19, 1
      %s331 = scalar_select %p330, %s19, 1
      %s332 = smul.addr %s331, 2
      %s333 = smul.addr %s332, 8
      %s334 = scalar_lea.vmem %s2, %s333
      %p335 = scmp.lt.s32.totalorder %s19, 1
      %s336 = scalar_select %p335, %s19, 1
      %s337 = smul.addr %s336, 2
      %s338 = smul.addr %s337, 8
      %s339 = scalar_lea.vmem %s3, %s338
      %p340 = scmp.lt.s32.totalorder %s19, 1
      %s341 = scalar_select %p340, %s19, 1
      %s342 = smul.addr %s341, 8
      %s343 = scalar_lea.vmem %s6, %s342
      %p344 = scmp.lt.s32.totalorder %s19, 1
      %s345 = scalar_select %p344, %s19, 1
      %s346 = smul.addr %s345, 2
      %s347 = scalar_lea.vmem %s7, %s346
      %v348 = vld [vmem:[%s324] sm:$0xff]
      %v349 = vld [vmem:[%s4] sm:$0x1]
      %v351 = vlaneseq
      %v352 = vshrl.u32 %v351, 7
      %v353 = vsub.s32 0, %v352
      %v354 = vrot.slane %v349, %v353
      %v356 = vmul.f32 %v348, %v354
      %v357 = vld [vmem:[%s329] sm:$0xff]
      %s358 = scalar_lea.vmem %s4, 1
      %v359 = vld [vmem:[%s358] sm:$0x1]
      %v361 = vlaneseq
      %v362 = vshrl.u32 %v361, 7
      %v363 = vsub.s32 0, %v362
      %v364 = vrot.slane %v359, %v363
      %v366 = vmul.f32 %v357, %v364
      %v367 = vadd.f32 %v356, %v366
      %s368 = scalar_lea.vmem %s4, 2
      %v369 = vld [vmem:[%s368] sm:$0x1]
      %v371 = vlaneseq
      %v372 = vshrl.u32 %v371, 7
      %v373 = vsub.s32 0, %v372
      %v374 = vrot.slane %v369, %v373
      %375 = vrot.lane.b32.xlu0 %v374, 4
      %v376 = vpop.permute.xlu0 %375
      %v378 = vmul.f32 %v348, %v376
      %380 = vrot.lane.b32.xlu0 %v378, 124
      %v381 = vpop.permute.xlu0 %380
      %v383 = vadd.f32 %v367, %v381
      %v384 = vld [vmem:[%s334] sm:$0xff]
      %s385 = scalar_lea.vmem %s4, 3
      %v386 = vld [vmem:[%s385] sm:$0x1]
      %v388 = vlaneseq
      %v389 = vshrl.u32 %v388, 7
      %v390 = vsub.s32 0, %v389
      %v391 = vrot.slane %v386, %v390
      %v393 = vmul.f32 %v384, %v391
      %v394 = vadd.f32 %v383, %v393
      %v395 = vld [vmem:[%s339] sm:$0xff]
      %s396 = scalar_lea.vmem %s4, 4
      %v397 = vld [vmem:[%s396] sm:$0x1]
      %v399 = vlaneseq
      %v400 = vshrl.u32 %v399, 7
      %v401 = vsub.s32 0, %v400
      %v402 = vrot.slane %v397, %v401
      %v404 = vmul.f32 %v395, %v402
      %v405 = vadd.f32 %v394, %v404
      %s406 = scalar_lea.vmem %s4, 5
      %v407 = vld [vmem:[%s406] sm:$0x1]
      %v409 = vlaneseq
      %v410 = vshrl.u32 %v409, 7
      %v411 = vsub.s32 0, %v410
      %v412 = vrot.slane %v407, %v411
      %413 = vrot.lane.b32.xlu0 %v412, 4
      %v414 = vpop.permute.xlu0 %413
      %v416 = vmul.f32 %v384, %v414
      %418 = vrot.lane.b32.xlu0 %v416, 124
      %v419 = vpop.permute.xlu0 %418
      %v421 = vadd.f32 %v405, %v419
      %v422 = vld [vmem:[%s324 + $0x1] sm:$0xff]
      %s423 = scalar_lea.vmem %s4, 6
      %v424 = vld [vmem:[%s423] sm:$0x1]
      %v426 = vlaneseq
      %v427 = vshrl.u32 %v426, 7
      %v428 = vsub.s32 0, %v427
      %v429 = vrot.slane %v424, %v428
      %v431 = vmul.f32 %v422, %v429
      %v432 = vadd.f32 %v421, %v431
      %v433 = vld [vmem:[%s329 + $0x1] sm:$0xff]
      %s434 = scalar_lea.vmem %s4, 7
      %v435 = vld [vmem:[%s434] sm:$0x1]
      %v437 = vlaneseq
      %v438 = vshrl.u32 %v437, 7
      %v439 = vsub.s32 0, %v438
      %v440 = vrot.slane %v435, %v439
      %v442 = vmul.f32 %v433, %v440
      %v443 = vadd.f32 %v432, %v442
      %s444 = scalar_lea.vmem %s4, 8
      %v445 = vld [vmem:[%s444] sm:$0x1]
      %v447 = vlaneseq
      %v448 = vshrl.u32 %v447, 7
      %v449 = vsub.s32 0, %v448
      %v450 = vrot.slane %v445, %v449
      %451 = vrot.lane.b32.xlu0 %v450, 4
      %v452 = vpop.permute.xlu0 %451
      %v454 = vmul.f32 %v422, %v452
      %456 = vrot.lane.b32.xlu0 %v454, 124
      %v457 = vpop.permute.xlu0 %456
      %v459 = vadd.f32 %v443, %v457
      %v460 = vld [vmem:[%s5] sm:$0xff]
      %v461 = vld [vmem:[%s5 + $0x8] sm:$0xff]
      %v462 = vld [vmem:[%s5 + $0x10] sm:$0xff]
      %v463 = vld [vmem:[%s5 + $0x18] sm:$0xff]
      %vm464 = vcmask 261120
      %v466 = vsel %vm464, %v459, 0
      %468 = vmatprep.subr.mxu0 0.0
      %469 = vmatpush1.msra.mxu0 %v460
      %470 = vmatprep.subr.mxu0 0.0
      %471 = vmatpush1.msra.mxu0 %v461
      %472 = vmatprep.subr.mxu0 0.0
      %473 = vmatpush1.msra.mxu0 %v462
      %474 = vmatprep.subr.mxu0 0.0
      %475 = vmatpush1.msra.mxu0 %v463
      %476 = vmatprep.subr.mxu0 0.0
      %477 = vmatpush1.msra.mxu0 0.0
      %478 = vmatprep.subr.mxu0 0.0
      %479 = vmatpush1.msra.mxu0 0.0
      %480 = vmatprep.subr.mxu0 0.0
      %481 = vmatpush1.msra.mxu0 0.0
      %482 = vmatprep.subr.mxu0 0.0
      %483 = vmatpush1.msra.mxu0 0.0
      %484 = vmatprep.subr.mxu0 0.0
      %485 = vmatpush1.msra.mxu0 0.0
      %486 = vmatprep.subr.mxu0 0.0
      %487 = vmatpush1.msra.mxu0 0.0
      %488 = vmatprep.subr.mxu0 0.0
      %489 = vmatpush1.msra.mxu0 0.0
      %490 = vmatprep.subr.mxu0 0.0
      %491 = vmatpush1.msra.mxu0 0.0
      %492 = vmatprep.subr.mxu0 0.0
      %493 = vmatpush1.msra.mxu0 0.0
      %494 = vmatprep.subr.mxu0 0.0
      %495 = vmatpush1.msra.mxu0 0.0
      %496 = vmatprep.subr.mxu0 0.0
      %497 = vmatpush1.msra.mxu0 0.0
      %498 = vmatprep.subr.mxu0 0.0
      %499 = vmatpush1.msra.mxu0 0.0
      %500 = vmatprep.subr.mxu0 0.0
      %501 = vmatpush1.msra.mxu0 0.0
      %502 = vmatprep.subr.mxu0 0.0
      %503 = vmatpush1.msra.mxu0 0.0
      %504 = vmatprep.subr.mxu0 0.0
      %505 = vmatpush1.msra.mxu0 0.0
      %506 = vmatprep.subr.mxu0 0.0
      %507 = vmatpush1.msra.mxu0 0.0
      %508 = vmatprep.subr.mxu0 0.0
      %509 = vmatpush1.msra.mxu0 0.0
      %510 = vmatprep.subr.mxu0 0.0
      %511 = vmatpush1.msra.mxu0 0.0
      %512 = vmatprep.subr.mxu0 0.0
      %513 = vmatpush1.msra.mxu0 0.0
      %514 = vmatprep.subr.mxu0 0.0
      %515 = vmatpush1.msra.mxu0 0.0
      %516 = vmatprep.subr.mxu0 0.0
      %517 = vmatpush1.msra.mxu0 0.0
      %518 = vmatprep.subr.mxu0 0.0
      %519 = vmatpush1.msra.mxu0 0.0
      %520 = vmatprep.subr.mxu0 0.0
      %521 = vmatpush1.msra.mxu0 0.0
      %522 = vmatprep.subr.mxu0 0.0
      %523 = vmatpush1.msra.mxu0 0.0
      %524 = vmatprep.subr.mxu0 0.0
      %525 = vmatpush1.msra.mxu0 0.0
      %526 = vmatprep.subr.mxu0 0.0
      %527 = vmatpush1.msra.mxu0 0.0
      %528 = vmatprep.subr.mxu0 0.0
      %529 = vmatpush1.msra.mxu0 0.0
      %530 = vmatprep.subr.mxu0 0.0
      %531 = vmatpush1.msra.mxu0 0.0
      %532 = vmatprep.mubr.f32.mxu0 0.0
      %533 = vmatmul.mubr.f32.gmra.mrb[0].mxu0 %v466
      %v534 = vpop.f32.mrb[0].mxu0
      %v535 = vadd.f32 0.0, %v534
      %v536 = vpop.f32.mrb[0].mxu0
      %537 = vdwg.mxu0
      %vm538 = vcmask 523264
      %539 = vst.msk [vmem:[%s343] sm:$0xff] %vm538, %v535
      %v540 = vsel %vm538, %v535, 0.0
      %v541 = vrot.slane %v540, 4
      %v542 = vadd.f32 %v540, %v541
      %v543 = vrot.slane %v542, 2
      %v544 = vadd.f32 %v542, %v543
      %v545 = vrot.slane %v544, 1
      %v546 = vadd.f32 %v544, %v545
      %v547 = vmul.f32 %v535, %v535
      %v548 = vsel %vm538, %v547, 0.0
      %v549 = vrot.slane %v548, 4
      %v550 = vadd.f32 %v548, %v549
      %v551 = vrot.slane %v550, 2
      %v552 = vadd.f32 %v550, %v551
      %v553 = vrot.slane %v552, 1
      %v554 = vadd.f32 %v552, %v553
      %vm555 = vcmask 516096
      %556 = vst.msk [vmem:[%s347] sm:$0x1] %vm555, %v546
      %557 = vst.msk [vmem:[%s347 + $0x1] sm:$0x1] %vm555, %v554
      %p558 = scmp.lt.s32.totalorder %s19, 1
      %s559 = scalar_select %p558, %s19, 1
      %s560 = smul.addr %s559, 8
      %s561 = scalar_lea.vmem %s6, %s560
      %p562 = scmp.lt.s32.totalorder %s19, 1
      %s563 = scalar_select %p562, %s19, 1
      %s564 = smul.addr %s563, 2
      %s565 = scalar_lea.vmem %s7, %s564
      // Predicated region
      $region45: #{sepconv1_forward.2} parent=43 // pred_check
        %p566 = pneg %p183
      $region46: #{sepconv1_forward.2} parent=43 // pred_check_branch
        %568 = sbr.rel (%p566) target = $region48
      $region47: #{sepconv1_forward.2} parent=43 // pred_region
        _
      $region48: #{sepconv1_forward.2} parent=43 // pred_fallthru
        _
      // Predicated region
      $region49: #{sepconv1_forward.2} parent=43 // pred_check
        %p569 = pneg %p209
      $region50: #{sepconv1_forward.2} parent=43 // pred_check_branch
        %571 = sbr.rel (%p569) target = $region52
      $region51: #{sepconv1_forward.2} parent=43 // pred_region
        _
      $region52: #{sepconv1_forward.2} parent=43 // pred_fallthru
        _
    $region44: #{sepconv1_forward.2} parent=5 // pred_fallthru
      _
    %p572 = scmp.le.s32.totalorder 2, %s14
    // Predicated region
    $region53: #{sepconv1_forward.2} parent=5 // pred_check
      %p573 = pneg %p572
    $region54: #{sepconv1_forward.2} parent=5 // pred_check_branch
      %575 = sbr.rel (%p573) target = $region56
    $region55: #{sepconv1_forward.2} parent=5 // pred_region
      %s576 = ssub.s32 %s14, 2
      // Predicated region
      $region57: #{sepconv1_forward.2} parent=55 // pred_check
        %p577 = pneg %p189
      $region58: #{sepconv1_forward.2} parent=55 // pred_check_branch
        %579 = sbr.rel (%p577) target = $region60
      $region59: #{sepconv1_forward.2} parent=55 // pred_region
        %p580 = scmp.lt.s32.totalorder %s20, 1
        %s581 = scalar_select %p580, %s20, 1
        %s582 = smul.addr %s581, 8
        %s583 = scalar_lea.vmem %s6, %s582
      $region60: #{sepconv1_forward.2} parent=55 // pred_fallthru
        _
      // Predicated region
      $region61: #{sepconv1_forward.2} parent=55 // pred_check
        %p584 = pneg %p215
      $region62: #{sepconv1_forward.2} parent=55 // pred_check_branch
        %586 = sbr.rel (%p584) target = $region64
      $region63: #{sepconv1_forward.2} parent=55 // pred_region
        %p587 = scmp.lt.s32.totalorder %s20, 1
        %s588 = scalar_select %p587, %s20, 1
        %s589 = smul.addr %s588, 2
        %s590 = scalar_lea.vmem %s7, %s589
      $region64: #{sepconv1_forward.2} parent=55 // pred_fallthru
        _
    $region56: #{sepconv1_forward.2} parent=5 // pred_fallthru
      _
  $region6: #{sepconv1_forward.2} parent=0 // loop_footer
    %s18 = sadd.s32 1, %s14
  $region7: #{sepconv1_forward.2} parent=0 // loop_footer_branch
    %13 = sbr.rel target = $region3
  $region8: #{sepconv1_forward.2} parent=0 // loop_exit
    _

</llo_original>
